<compile_context>
chip_gen: v7x
topology: tpu7x:2x2x1
jax: 0.10.0
libtpu: 0.0.40
codegen_flags: <defaults>
</compile_context>

<pallas_src>
import functools

import jax
import jax.numpy as jnp
from jax import lax
from jax.experimental import pallas as pl
from jax.experimental.pallas import tpu as pltpu


def _lora_kernel(w_ref, a_t_ref, b_ref, o_ref, *, scale):
    # delta[tm, tn] = sum_r A_T[r, tm] * B[r, tn]  -- contract the tiny rank
    # dim (sublane axis) on the MXU, accumulate in f32.
    delta = lax.dot_general(
        a_t_ref[...], b_ref[...],
        dimension_numbers=(((0,), (0,)), ((), ())),
        preferred_element_type=jnp.float32)
    # Fused residual add + scale + cast back to the weight dtype (VPU filler).
    o_ref[...] = (w_ref[...].astype(jnp.float32) + delta * scale).astype(o_ref.dtype)


def _pick_tile(dim, cap):
    """Largest tile <= cap that is a multiple of 128 and divides dim,
    or the full extent (always a legal block shape).

    The multiple-of-128 requirement also covers the (rank, tile) BlockSpecs of
    lora_A^T / lora_B, where the tile is the lane (last) dimension.
    """
    if dim <= cap:
        return dim
    t = (cap // 128) * 128
    while t >= 128:
        if dim % t == 0:
            return t
        t -= 128
    return dim  # fall back to full extent


def lora_parametrisation(original_weights, lora_A, lora_B, alpha=1, enabled=True,
                         tm_max=512, tn_max=1024):
    """JAX/Pallas equivalent of LoRaParametrisation.forward."""
    if not enabled:
        return original_weights

    in_channel, rank = lora_A.shape
    rank_b, out_channel = lora_B.shape
    assert rank == rank_b
    assert original_weights.size == in_channel * out_channel
    scale = float(alpha) / float(rank)

    # Glue: present W in the (in_channel, out_channel) matmul layout (row-major
    # reshape == torch .view on contiguous data). Transpose lora_A on the host
    # side (tiny array) so rank lands on the sublane axis in VMEM.
    w2d = original_weights.reshape(in_channel, out_channel)
    a_t = jnp.transpose(lora_A)  # (rank, in_channel)

    tm = _pick_tile(in_channel, tm_max)
    tn = _pick_tile(out_channel, tn_max)
    grid = (in_channel // tm, out_channel // tn)

    w_bytes = jnp.dtype(original_weights.dtype).itemsize
    ab_bytes = jnp.dtype(lora_A.dtype).itemsize

    # Double-buffered W-in + O-out tiles plus (sublane-padded) A/B slices.
    vmem_est = 2 * (2 * tm * tn * w_bytes + max(rank, 8) * (tm + tn) * ab_bytes)
    # Generous headroom, but stay under v7x's 64 MiB physical VMEM.
    vmem_limit = int(min(64 * 1024 * 1024,
                         max(32 * 1024 * 1024, 1.5 * vmem_est)))

    cost = pl.CostEstimate(
        flops=2 * in_channel * out_channel * rank + 2 * in_channel * out_channel,
        transcendentals=0,
        bytes_accessed=2 * in_channel * out_channel * w_bytes
                       + (in_channel + out_channel) * rank * ab_bytes,
    )

    out2d = pl.pallas_call(
        functools.partial(_lora_kernel, scale=scale),
        out_shape=jax.ShapeDtypeStruct((in_channel, out_channel),
                                       original_weights.dtype),
        grid_spec=pltpu.PrefetchScalarGridSpec(
            num_scalar_prefetch=0,
            grid=grid,
            in_specs=[
                pl.BlockSpec((tm, tn), lambda i, j: (i, j)),    # W tile
                pl.BlockSpec((rank, tm), lambda i, j: (0, i)),  # lora_A^T slice
                pl.BlockSpec((rank, tn), lambda i, j: (0, j)),  # lora_B slice
            ],
            out_specs=pl.BlockSpec((tm, tn), lambda i, j: (i, j)),
        ),
        compiler_params=pltpu.CompilerParams(
            dimension_semantics=("parallel", "parallel"),
            vmem_limit_bytes=vmem_limit),
        input_output_aliases={0: 0},   # reuse W's HBM buffer for the output
        cost_estimate=cost,
    )(w2d, a_t, lora_B)

    return out2d.reshape(original_weights.shape)


if __name__ == "__main__":
    # Small shapes consistent with the module (a Linear weight being
    # parametrised): in_channel=256, out_channel=512, rank=2, alpha=1.
    in_channel, out_channel, rank, alpha = 256, 512, 2, 1
    scale = alpha / rank

    key = jax.random.PRNGKey(0)
    k_w, k_a, k_b = jax.random.split(key, 3)

    lora_A = jax.random.normal(k_a, (in_channel, rank), dtype=jnp.float32)
    lora_B_zero = jnp.zeros((rank, out_channel), dtype=jnp.float32)  # module init
    lora_B = jax.random.normal(k_b, (rank, out_channel), dtype=jnp.float32) * 0.1
    original_weights = jax.random.normal(
        k_w, (in_channel, out_channel), dtype=jnp.float32)

    # 1) f32, module-faithful init (lora_B == 0) -> identity parametrisation.
    out0 = jax.block_until_ready(
        lora_parametrisation(original_weights, lora_A, lora_B_zero, alpha=alpha,
                             tm_max=128, tn_max=128))
    assert out0.shape == original_weights.shape
    assert out0.dtype == original_weights.dtype
    assert jnp.allclose(out0, original_weights, atol=1e-5, rtol=1e-5)

    # 2) f32, nonzero lora_B, multi-tile grid (tm=128, tn=128 -> grid (2, 4)).
    out1 = jax.block_until_ready(
        lora_parametrisation(original_weights, lora_A, lora_B, alpha=alpha,
                             tm_max=128, tn_max=128))
    ref1 = original_weights + (lora_A @ lora_B).reshape(original_weights.shape) * scale
    assert jnp.allclose(out1, ref1, atol=1e-5, rtol=1e-5)

    # 3) bf16 weights/params, default (large) tiles -> single-tile grid.
    w_bf16 = original_weights.astype(jnp.bfloat16)
    a_bf16 = lora_A.astype(jnp.bfloat16)
    b_bf16 = lora_B.astype(jnp.bfloat16)
    out2 = jax.block_until_ready(
        lora_parametrisation(w_bf16, a_bf16, b_bf16, alpha=alpha))
    ref2 = (w_bf16.astype(jnp.float32)
            + (a_bf16.astype(jnp.float32) @ b_bf16.astype(jnp.float32)) * scale
            ).astype(jnp.bfloat16)
    assert out2.dtype == jnp.bfloat16
    assert jnp.allclose(out2.astype(jnp.float32), ref2.astype(jnp.float32),
                        atol=2e-2, rtol=2e-2)

    # 4) non-2D weight shape (torch .view semantics): (4, 64, 512) viewed from
    #    the same (256, 512) delta.
    w3d = original_weights.reshape(4, 64, 512)
    out3 = jax.block_until_ready(
        lora_parametrisation(w3d, lora_A, lora_B, alpha=alpha))
    assert out3.shape == w3d.shape
    assert jnp.allclose(out3.reshape(in_channel, out_channel), ref1,
                        atol=1e-5, rtol=1e-5)

    print("KERNEL_OK")
</pallas_src>

<mosaic_0001>
module attributes {stable_mosaic.version = 11 : i64} {
  func.func @_lora_kernel(%arg0: i32, %arg1: i32, %arg2: memref<128x128xf32, #tpu.memory_space<vmem>>, %arg3: memref<2x128xf32, #tpu.memory_space<vmem>>, %arg4: memref<2x128xf32, #tpu.memory_space<vmem>>, %arg5: memref<128x128xf32, #tpu.memory_space<vmem>>) attributes {dimension_semantics = [#tpu.dimension_semantics<parallel>, #tpu.dimension_semantics<parallel>], iteration_bounds = array<i64: 2, 4>, scalar_prefetch = 0 : i64, scratch_operands = 0 : i64, tpu.core_type = #tpu.core_type<tc>, window_params = [{transform_indices = @transform_0, window_bounds = array<i64: 128, 128>}, {transform_indices = @transform_1, window_bounds = array<i64: 2, 128>}, {transform_indices = @transform_2, window_bounds = array<i64: 2, 128>}, {transform_indices = @transform_3, window_bounds = array<i64: 128, 128>}]} {
    %c0 = arith.constant 0 : index
    %c0_0 = arith.constant 0 : index
    %0 = vector.load %arg3[%c0, %c0_0] : memref<2x128xf32, #tpu.memory_space<vmem>>, vector<2x128xf32>
    %c0_1 = arith.constant 0 : index
    %c0_2 = arith.constant 0 : index
    %1 = vector.load %arg4[%c0_1, %c0_2] : memref<2x128xf32, #tpu.memory_space<vmem>>, vector<2x128xf32>
    %cst = arith.constant dense<0.000000e+00> : vector<128x128xf32>
    %2 = tpu.matmul %0, %1, %cst {dimension_numbers = #tpu.dot_dimension_numbers<[0], [0], [1], [1], [0, 1, 1, 1], [], []>} : vector<2x128xf32>, vector<2x128xf32>, vector<128x128xf32> -> vector<128x128xf32>
    %c0_3 = arith.constant 0 : index
    %c0_4 = arith.constant 0 : index
    %3 = vector.load %arg2[%c0_3, %c0_4] : memref<128x128xf32, #tpu.memory_space<vmem>>, vector<128x128xf32>
    %cst_5 = arith.constant 5.000000e-01 : f32
    %4 = vector.broadcast %cst_5 : f32 to vector<128x128xf32>
    %5 = arith.mulf %2, %4 : vector<128x128xf32>
    %6 = arith.addf %3, %5 : vector<128x128xf32>
    %c0_6 = arith.constant 0 : index
    %c0_7 = arith.constant 0 : index
    %7 = vector.load %arg5[%c0_6, %c0_7] : memref<128x128xf32, #tpu.memory_space<vmem>>, vector<128x128xf32>
    tpu.vector_store %arg5[%c0_6, %c0_7], %6 {strides = array<i32>} : memref<128x128xf32, #tpu.memory_space<vmem>>, vector<128x128xf32>,
    return
  }
  func.func @transform_0(%arg0: i32, %arg1: i32) -> (i32, i32) {
    %c0_i32 = arith.constant 0 : i32
    return %arg0, %arg1 : i32, i32
  }
  func.func @transform_1(%arg0: i32, %arg1: i32) -> (i32, i32) {
    %c0_i32 = arith.constant 0 : i32
    %c0_i32_0 = arith.constant 0 : i32
    return %c0_i32, %arg0 : i32, i32
  }
  func.func @transform_2(%arg0: i32, %arg1: i32) -> (i32, i32) {
    %c0_i32 = arith.constant 0 : i32
    %c0_i32_0 = arith.constant 0 : i32
    return %c0_i32, %arg1 : i32, i32
  }
  func.func @transform_3(%arg0: i32, %arg1: i32) -> (i32, i32) {
    %c0_i32 = arith.constant 0 : i32
    return %arg0, %arg1 : i32, i32
  }
}

</mosaic_0001>

<llo_original>
// kernel: tpu_custom_call.1
$region0: #{tpu_custom_call.1}
  #allocation0 [shape = 'u32[]', space=smem, size = 0x4, offset = 0x4, fixed_abs, tag = 'smem constant byte address 0x4 - core index']
  #allocation1 [shape = 'u32[144,128]{1,0:T(1,128)}', space=vmem, size = 0x12000, scoped, tag = 'internal scratch']
  %s0 = inlined_call_operand.hbm [shape: f32[256,512], index: 0, kind: input, shape index: {}, may-alias: {0,3}]
  %s1 = inlined_call_operand.vmem [shape: f32[2,256], index: 1, kind: input, shape index: {}]
  %s2 = inlined_call_operand.vmem [shape: f32[2,512], index: 2, kind: input, shape index: {}]
  %s3 = inlined_call_operand.hbm [shape: f32[256,512], index: 3, kind: output, shape index: {}, may-alias: {0,3}]
  %s4 = sld [smem:[#allocation0]]
  $region49: #{tpu_custom_call.1} parent=0
    _
  %s6 = ssub.s32 1, %s4
  %s7 = scalar_select 0, %s6, %s4
  $region1: #{tpu_custom_call.1} parent=0
    #allocation2 [shape = 'u8[131072]{0}', space=vmem, size = 0x20000, scoped, tag = 'input window, operand 0']
    #allocation3 [shape = 's32[2]{0}', space=sflag, size = 0x8, scoped, tag = 'scoped memory for tpu_custom_call.1']
    #allocation4 [shape = 's32[2]{0}', space=sflag, size = 0x8, scoped, tag = 'scoped memory for tpu_custom_call.1']
    #allocation5 [shape = 'u8[131072]{0}', space=vmem, size = 0x20000, scoped, tag = 'output window, operand 0']
    %8 = vsyncpa [#allocation3], 0
    %s9 = scalar_lea.sflag [#allocation3], 1
    %10 = vsyncpa %s9, 0
    %11 = vsyncpa [#allocation4], 0
    %s12 = scalar_lea.sflag [#allocation4], 1
    %13 = vsyncpa %s12, 0
    loop: start=0, step=1, limit=10
    $region2: #{tpu_custom_call.1} parent=1 // loop_pre_header
      _
    $region3: #{tpu_custom_call.1} parent=1 // loop_header
      %s15 = sphi 0, %s19
      %p16 = scmp.ge.s32.totalorder %s15, 10
      %s22 = sphi 0, %s34
      %s23 = sphi 0, %s30
      %s24 = sphi 0, %s22
      %s25 = sphi 0, %s23
      %s26 = sphi 0, %s24
      %s27 = sphi 0, %s25
      %s39 = sphi 0, %s41
      %s42 = sphi 0, %s39
      %s43 = sphi 0, %s42
      %s59 = sphi 0, %s43
      %s65 = sphi 0, %s67
      %s68 = sphi 0, %s65
      %s69 = sphi 0, %s68
      %s85 = sphi 0, %s69
      %s91 = sphi 0, %s93
      %s94 = sphi 0, %s91
      %s95 = sphi 0, %s94
      %s111 = sphi 0, %s95
      %s119 = sphi 0, %s121
      %s122 = sphi 0, %s119
      %s123 = sphi 0, %s122
      %s139 = sphi 0, %s123
    $region4: #{tpu_custom_call.1} parent=1 // loop_header_branch
      %18 = sbr.rel (%p16) target = $region8
    $region5: #{tpu_custom_call.1} parent=1 // loop_body
      %s20 = ssub.s32 %s15, 1
      %s21 = ssub.s32 %s15, 2
      %s28 = sadd.s32 1, %s23
      %p29 = scmp.ge.s32.totalorder %s28, 4
      %s30 = scalar_select %p29, 0, %s28
      %s31 = sadd.s32 1, %s22
      %s32 = scalar_select %p29, %s31, %s22
      %p33 = scmp.ge.s32.totalorder %s32, 2
      %s34 = scalar_select %p33, 0, %s32
      %s35 = ssub.s32 %s22, %s34
      %s36 = ssub.s32 %s23, %s30
      %s37 = sor.u32 %s35, %s36
      %p38 = scmp.eq.s32.totalorder %s37, 0
      %s40 = sadd.s32 %s39, 1
      %s41 = scalar_select %p38, %s39, %s40
      %p44 = pneg %p38
      %p45 = scmp.eq.s32.totalorder %s15, 7
      %p46 = por %p44, %p45
      %p47 = scmp.ne.s32.totalorder %s39, %s42
      %p48 = scmp.eq.s32.totalorder %s15, 0
      %p49 = por %p47, %p48
      %p50 = scmp.ne.s32.totalorder %s39, %s42
      %p51 = scmp.eq.s32.totalorder %s20, 7
      %p52 = por %p50, %p51
      %p53 = scmp.ne.s32.totalorder %s42, %s43
      %p54 = scmp.eq.s32.totalorder %s20, 0
      %p55 = por %p53, %p54
      %p56 = scmp.ne.s32.totalorder %s42, %s43
      %p57 = scmp.eq.s32.totalorder %s21, 7
      %p58 = por %p56, %p57
      %p60 = scmp.ne.s32.totalorder %s43, %s59
      %p61 = scmp.eq.s32.totalorder %s21, 0
      %p62 = por %p60, %p61
      %s63 = ssub.s32 %s22, %s34
      %p64 = scmp.eq.s32.totalorder %s63, 0
      %s66 = sadd.s32 %s65, 1
      %s67 = scalar_select %p64, %s65, %s66
      %p70 = pneg %p64
      %p71 = scmp.eq.s32.totalorder %s15, 7
      %p72 = por %p70, %p71
      %p73 = scmp.ne.s32.totalorder %s65, %s68
      %p74 = scmp.eq.s32.totalorder %s15, 0
      %p75 = por %p73, %p74
      %p76 = scmp.ne.s32.totalorder %s65, %s68
      %p77 = scmp.eq.s32.totalorder %s20, 7
      %p78 = por %p76, %p77
      %p79 = scmp.ne.s32.totalorder %s68, %s69
      %p80 = scmp.eq.s32.totalorder %s20, 0
      %p81 = por %p79, %p80
      %p82 = scmp.ne.s32.totalorder %s68, %s69
      %p83 = scmp.eq.s32.totalorder %s21, 7
      %p84 = por %p82, %p83
      %p86 = scmp.ne.s32.totalorder %s69, %s85
      %p87 = scmp.eq.s32.totalorder %s21, 0
      %p88 = por %p86, %p87
      %s89 = ssub.s32 %s23, %s30
      %p90 = scmp.eq.s32.totalorder %s89, 0
      %s92 = sadd.s32 %s91, 1
      %s93 = scalar_select %p90, %s91, %s92
      %p96 = pneg %p90
      %p97 = scmp.eq.s32.totalorder %s15, 7
      %p98 = por %p96, %p97
      %p99 = scmp.ne.s32.totalorder %s91, %s94
      %p100 = scmp.eq.s32.totalorder %s15, 0
      %p101 = por %p99, %p100
      %p102 = scmp.ne.s32.totalorder %s91, %s94
      %p103 = scmp.eq.s32.totalorder %s20, 7
      %p104 = por %p102, %p103
      %p105 = scmp.ne.s32.totalorder %s94, %s95
      %p106 = scmp.eq.s32.totalorder %s20, 0
      %p107 = por %p105, %p106
      %p108 = scmp.ne.s32.totalorder %s94, %s95
      %p109 = scmp.eq.s32.totalorder %s21, 7
      %p110 = por %p108, %p109
      %p112 = scmp.ne.s32.totalorder %s95, %s111
      %p113 = scmp.eq.s32.totalorder %s21, 0
      %p114 = por %p112, %p113
      %s115 = ssub.s32 %s22, %s34
      %s116 = ssub.s32 %s23, %s30
      %s117 = sor.u32 %s115, %s116
      %p118 = scmp.eq.s32.totalorder %s117, 0
      %s120 = sadd.s32 %s119, 1
      %s121 = scalar_select %p118, %s119, %s120
      %p124 = pneg %p118
      %p125 = scmp.eq.s32.totalorder %s15, 7
      %p126 = por %p124, %p125
      %p127 = scmp.ne.s32.totalorder %s119, %s122
      %p128 = scmp.eq.s32.totalorder %s15, 0
      %p129 = por %p127, %p128
      %p130 = scmp.ne.s32.totalorder %s119, %s122
      %p131 = scmp.eq.s32.totalorder %s20, 7
      %p132 = por %p130, %p131
      %p133 = scmp.ne.s32.totalorder %s122, %s123
      %p134 = scmp.eq.s32.totalorder %s20, 0
      %p135 = por %p133, %p134
      %p136 = scmp.ne.s32.totalorder %s122, %s123
      %p137 = scmp.eq.s32.totalorder %s21, 7
      %p138 = por %p136, %p137
      %p140 = scmp.ne.s32.totalorder %s123, %s139
      %p141 = scmp.eq.s32.totalorder %s21, 0
      %p142 = por %p140, %p141
      %p143 = scmp.le.s32.totalorder 1, %s15
      %p144 = scmp.lt.s32.totalorder %s15, 9
      %p145 = pnand %p143, %p144
      %p146 = pneg %p145
      // Predicated region
      $region9: #{tpu_custom_call.1} parent=5 // pred_check
        _
      $region10: #{tpu_custom_call.1} parent=5 // pred_check_branch
        %148 = sbr.rel (%p145) target = $region12
      $region11: #{tpu_custom_call.1} parent=5 // pred_region
        %s149 = ssub.s32 %s15, 1
      $region12: #{tpu_custom_call.1} parent=5 // pred_fallthru
        _
      %p150 = scmp.lt.s32.totalorder %s15, 8
      // Predicated region
      $region13: #{tpu_custom_call.1} parent=5 // pred_check
        %p151 = pneg %p150
      $region14: #{tpu_custom_call.1} parent=5 // pred_check_branch
        %153 = sbr.rel (%p151) target = $region16
      $region15: #{tpu_custom_call.1} parent=5 // pred_region
        // Predicated region
        $region17: #{tpu_custom_call.1} parent=15 // pred_check
          %p154 = pneg %p49
        $region18: #{tpu_custom_call.1} parent=15 // pred_check_branch
          %156 = sbr.rel (%p154) target = $region20
        $region19: #{tpu_custom_call.1} parent=15 // pred_region
          %s157 = sand.u32 %s39, 1
          %s158 = scalar_lea.sflag [#allocation3], %s157
          %s159 = sand.u32 %s39, 1
          %s160 = smul.addr %s159, 128
          %s161 = scalar_lea.vmem [#allocation2], %s160
          %s162 = smul.u32 16, %s22
          %s164 = ssub.s32 2048, 2048
          %165 = vsyncadd %s158, %s164
          %s166 = smul.addr %s162, 4
          %s167 = sadd.s32 %s23, %s166
          %s168 = smul.addr %s167, 128
          %s169 = scalar_lea.hbm %s0, %s168
          %s170 = sshll.u32 %s161, 4
          %s171 = int_to_ptr.vmem [resolvable:$true] %s170
          %176 = dma.hbm_to_vmem [thread:$0]  %s169, 2048, %s171, %s158, 512, 128, 8
        $region20: #{tpu_custom_call.1} parent=15 // pred_fallthru
          _
        // Predicated region
        $region21: #{tpu_custom_call.1} parent=15 // pred_check
          %p177 = pneg %p75
        $region22: #{tpu_custom_call.1} parent=15 // pred_check_branch
          %179 = sbr.rel (%p177) target = $region24
        $region23: #{tpu_custom_call.1} parent=15 // pred_region
          %p180 = scmp.lt.s32.totalorder %s22, 1
          %s181 = scalar_select %p180, %s22, 1
          %s182 = smul.addr %s181, 2
          %s183 = scalar_lea.vmem %s1, %s182
        $region24: #{tpu_custom_call.1} parent=15 // pred_fallthru
          _
        // Predicated region
        $region25: #{tpu_custom_call.1} parent=15 // pred_check
          %p184 = pneg %p101
        $region26: #{tpu_custom_call.1} parent=15 // pred_check_branch
          %186 = sbr.rel (%p184) target = $region28
        $region27: #{tpu_custom_call.1} parent=15 // pred_region
          %p187 = scmp.lt.s32.totalorder %s23, 3
          %s188 = scalar_select %p187, %s23, 3
          %s189 = smul.addr %s188, 2
          %s190 = scalar_lea.vmem %s2, %s189
        $region28: #{tpu_custom_call.1} parent=15 // pred_fallthru
          _
      $region16: #{tpu_custom_call.1} parent=5 // pred_fallthru
        _
      %p191 = scmp.le.s32.totalorder 1, %s15
      %p192 = scmp.lt.s32.totalorder %s15, 9
      %p193 = pnand %p191, %p192
      %p194 = pneg %p193
      // Predicated region
      $region29: #{tpu_custom_call.1} parent=5 // pred_check
        _
      $region30: #{tpu_custom_call.1} parent=5 // pred_check_branch
        %196 = sbr.rel (%p193) target = $region32
      $region31: #{tpu_custom_call.1} parent=5 // pred_region
        %s197 = ssub.s32 %s15, 1
        %s198 = sand.u32 %s42, 1
        %s199 = scalar_lea.sflag [#allocation3], %s198
        %s200 = sand.u32 %s42, 1
        %s201 = smul.addr %s200, 128
        %s202 = scalar_lea.vmem [#allocation2], %s201
        // Predicated region
        $region33: #{tpu_custom_call.1} parent=31 // pred_check
          %p203 = pneg %p55
        $region34: #{tpu_custom_call.1} parent=31 // pred_check_branch
          %205 = sbr.rel (%p203) target = $region36
        $region35: #{tpu_custom_call.1} parent=31 // pred_region
          %206 = dma.done %s199, 2048
        $region36: #{tpu_custom_call.1} parent=31 // pred_fallthru
          _
        %s207 = sand.u32 %s42, 1
        %s208 = scalar_lea.sflag [#allocation3], %s207
        %s209 = sand.u32 %s42, 1
        %s210 = smul.addr %s209, 128
        %s211 = scalar_lea.vmem [#allocation2], %s210
        %p212 = pneg %p55
        %p213 = pneg %p52
        %p214 = scmp.lt.s32.totalorder %s24, 1
        %s215 = scalar_select %p214, %s24, 1
        %s216 = smul.addr %s215, 2
        %s217 = scalar_lea.vmem %s1, %s216
        %p218 = pneg %p81
        %p219 = pneg %p78
        %p220 = scmp.lt.s32.totalorder %s25, 3
        %s221 = scalar_select %p220, %s25, 3
        %s222 = smul.addr %s221, 2
        %s223 = scalar_lea.vmem %s2, %s222
        %p224 = pneg %p107
        %p225 = pneg %p104
        %p226 = pneg %p135
        %p227 = pneg %p132
        %s228 = sand.u32 %s122, 1
        %s229 = scalar_lea.sflag [#allocation4], %s228
        %s230 = sand.u32 %s122, 1
        %s231 = smul.addr %s230, 128
        %s232 = scalar_lea.vmem [#allocation5], %s231
        %s233 = smul.u32 16, %s24
        %p234 = scmp.lt.s32.totalorder %s24, 1
        %s235 = scalar_select %p234, %s24, 1
        %s236 = smul.addr %s235, 2
        %s237 = scalar_lea.vmem %s1, %s236
        %p238 = scmp.lt.s32.totalorder %s25, 3
        %s239 = scalar_select %p238, %s25, 3
        %s240 = smul.addr %s239, 2
        %s241 = scalar_lea.vmem %s2, %s240
        %s242 = smul.u32 16, %s24
        %v243 = vld [vmem:[%s237] sm:$0x3]
        %v244 = vld [vmem:[%s241] sm:$0x3]
        %245 = vxpose.xlu0.b32.start [1/16] %v243, 128
        %246 = vxpose.xlu0.b32.cont [2/16] 0.0, 128
        %247 = vxpose.xlu0.b32.cont [3/16] 0.0, 128
        %248 = vxpose.xlu0.b32.cont [4/16] 0.0, 128
        %249 = vxpose.xlu0.b32.cont [5/16] 0.0, 128
        %250 = vxpose.xlu0.b32.cont [6/16] 0.0, 128
        %251 = vxpose.xlu0.b32.cont [7/16] 0.0, 128
        %252 = vxpose.xlu0.b32.cont [8/16] 0.0, 128
        %253 = vxpose.xlu0.b32.cont [9/16] 0.0, 128
        %254 = vxpose.xlu0.b32.cont [10/16] 0.0, 128
        %255 = vxpose.xlu0.b32.cont [11/16] 0.0, 128
        %256 = vxpose.xlu0.b32.cont [12/16] 0.0, 128
        %257 = vxpose.xlu0.b32.cont [13/16] 0.0, 128
        %258 = vxpose.xlu0.b32.cont [14/16] 0.0, 128
        %259 = vxpose.xlu0.b32.cont [15/16] 0.0, 128
        %260 = vxpose.xlu0.b32.end [16/16] 0.0, 128
        %v261 = vpop.trf.xlu0
        %v262 = vpop.trf.xlu0
        %v263 = vpop.trf.xlu0
        %v264 = vpop.trf.xlu0
        %v265 = vpop.trf.xlu0
        %v266 = vpop.trf.xlu0
        %v267 = vpop.trf.xlu0
        %v268 = vpop.trf.xlu0
        %v269 = vpop.trf.xlu0
        %v270 = vpop.trf.xlu0
        %v271 = vpop.trf.xlu0
        %v272 = vpop.trf.xlu0
        %v273 = vpop.trf.xlu0
        %v274 = vpop.trf.xlu0
        %v275 = vpop.trf.xlu0
        %v276 = vpop.trf.xlu0
        %vm277 = vcmask 15360
        %v279 = vsel %vm277, %v261, 0
        %v282 = vsel %vm277, %v262, 0
        %v285 = vsel %vm277, %v263, 0
        %v288 = vsel %vm277, %v264, 0
        %v291 = vsel %vm277, %v265, 0
        %v294 = vsel %vm277, %v266, 0
        %v297 = vsel %vm277, %v267, 0
        %v300 = vsel %vm277, %v268, 0
        %v303 = vsel %vm277, %v269, 0
        %v306 = vsel %vm277, %v270, 0
        %v309 = vsel %vm277, %v271, 0
        %v312 = vsel %vm277, %v272, 0
        %v315 = vsel %vm277, %v273, 0
        %v318 = vsel %vm277, %v274, 0
        %v321 = vsel %vm277, %v275, 0
        %v324 = vsel %vm277, %v276, 0
        %vm326 = vcmask 1041408
        %v328 = vsel %vm326, %v244, 0
        %330 = vmatprep.subr.mxu0 0.0
        %331 = vmatpush1.msra.mxu0 %v328
        %332 = vmatprep.subr.mxu0 0.0
        %333 = vmatpush1.msra.mxu0 0.0
        %334 = vmatprep.subr.mxu0 0.0
        %335 = vmatpush1.msra.mxu0 0.0
        %336 = vmatprep.subr.mxu0 0.0
        %337 = vmatpush1.msra.mxu0 0.0
        %338 = vmatprep.subr.mxu0 0.0
        %339 = vmatpush1.msra.mxu0 0.0
        %340 = vmatprep.subr.mxu0 0.0
        %341 = vmatpush1.msra.mxu0 0.0
        %342 = vmatprep.subr.mxu0 0.0
        %343 = vmatpush1.msra.mxu0 0.0
        %344 = vmatprep.subr.mxu0 0.0
        %345 = vmatpush1.msra.mxu0 0.0
        %346 = vmatprep.subr.mxu0 0.0
        %347 = vmatpush1.msra.mxu0 0.0
        %348 = vmatprep.subr.mxu0 0.0
        %349 = vmatpush1.msra.mxu0 0.0
        %350 = vmatprep.subr.mxu0 0.0
        %351 = vmatpush1.msra.mxu0 0.0
        %352 = vmatprep.subr.mxu0 0.0
        %353 = vmatpush1.msra.mxu0 0.0
        %354 = vmatprep.subr.mxu0 0.0
        %355 = vmatpush1.msra.mxu0 0.0
        %356 = vmatprep.subr.mxu0 0.0
        %357 = vmatpush1.msra.mxu0 0.0
        %358 = vmatprep.subr.mxu0 0.0
        %359 = vmatpush1.msra.mxu0 0.0
        %360 = vmatprep.subr.mxu0 0.0
        %361 = vmatpush1.msra.mxu0 0.0
        %362 = vmatprep.subr.mxu0 0.0
        %363 = vmatpush1.msra.mxu0 0.0
        %364 = vmatprep.subr.mxu0 0.0
        %365 = vmatpush1.msra.mxu0 0.0
        %366 = vmatprep.subr.mxu0 0.0
        %367 = vmatpush1.msra.mxu0 0.0
        %368 = vmatprep.subr.mxu0 0.0
        %369 = vmatpush1.msra.mxu0 0.0
        %370 = vmatprep.subr.mxu0 0.0
        %371 = vmatpush1.msra.mxu0 0.0
        %372 = vmatprep.subr.mxu0 0.0
        %373 = vmatpush1.msra.mxu0 0.0
        %374 = vmatprep.subr.mxu0 0.0
        %375 = vmatpush1.msra.mxu0 0.0
        %376 = vmatprep.subr.mxu0 0.0
        %377 = vmatpush1.msra.mxu0 0.0
        %378 = vmatprep.subr.mxu0 0.0
        %379 = vmatpush1.msra.mxu0 0.0
        %380 = vmatprep.subr.mxu0 0.0
        %381 = vmatpush1.msra.mxu0 0.0
        %382 = vmatprep.subr.mxu0 0.0
        %383 = vmatpush1.msra.mxu0 0.0
        %384 = vmatprep.subr.mxu0 0.0
        %385 = vmatpush1.msra.mxu0 0.0
        %386 = vmatprep.subr.mxu0 0.0
        %387 = vmatpush1.msra.mxu0 0.0
        %388 = vmatprep.subr.mxu0 0.0
        %389 = vmatpush1.msra.mxu0 0.0
        %390 = vmatprep.subr.mxu0 0.0
        %391 = vmatpush1.msra.mxu0 0.0
        %392 = vmatprep.subr.mxu0 0.0
        %393 = vmatpush1.msra.mxu0 0.0
        %394 = vmatprep.mubr.f32.mxu0 0.0
        %395 = vmatmul.mubr.f32.gmra.mrb[0].mxu0 %v279
        %v396 = vpop.f32.mrb[0].mxu0
        %v397 = vadd.f32 0.0, %v396
        %v398 = vpop.f32.mrb[0].mxu0
        %399 = vmatprep.mubr.f32.mxu0 0.0
        %400 = vmatmul.mubr.f32.gmra.mrb[0].mxu0 %v282
        %v401 = vpop.f32.mrb[0].mxu0
        %v402 = vadd.f32 0.0, %v401
        %v403 = vpop.f32.mrb[0].mxu0
        %404 = vmatprep.mubr.f32.mxu0 0.0
        %405 = vmatmul.mubr.f32.gmra.mrb[0].mxu0 %v285
        %v406 = vpop.f32.mrb[0].mxu0
        %v407 = vadd.f32 0.0, %v406
        %v408 = vpop.f32.mrb[0].mxu0
        %409 = vmatprep.mubr.f32.mxu0 0.0
        %410 = vmatmul.mubr.f32.gmra.mrb[0].mxu0 %v288
        %v411 = vpop.f32.mrb[0].mxu0
        %v412 = vadd.f32 0.0, %v411
        %v413 = vpop.f32.mrb[0].mxu0
        %414 = vmatprep.mubr.f32.mxu0 0.0
        %415 = vmatmul.mubr.f32.gmra.mrb[0].mxu0 %v291
        %v416 = vpop.f32.mrb[0].mxu0
        %v417 = vadd.f32 0.0, %v416
        %v418 = vpop.f32.mrb[0].mxu0
        %419 = vmatprep.mubr.f32.mxu0 0.0
        %420 = vmatmul.mubr.f32.gmra.mrb[0].mxu0 %v294
        %v421 = vpop.f32.mrb[0].mxu0
        %v422 = vadd.f32 0.0, %v421
        %v423 = vpop.f32.mrb[0].mxu0
        %424 = vmatprep.mubr.f32.mxu0 0.0
        %425 = vmatmul.mubr.f32.gmra.mrb[0].mxu0 %v297
        %v426 = vpop.f32.mrb[0].mxu0
        %v427 = vadd.f32 0.0, %v426
        %v428 = vpop.f32.mrb[0].mxu0
        %429 = vmatprep.mubr.f32.mxu0 0.0
        %430 = vmatmul.mubr.f32.gmra.mrb[0].mxu0 %v300
        %v431 = vpop.f32.mrb[0].mxu0
        %v432 = vadd.f32 0.0, %v431
        %v433 = vpop.f32.mrb[0].mxu0
        %434 = vmatprep.mubr.f32.mxu0 0.0
        %435 = vmatmul.mubr.f32.gmra.mrb[0].mxu0 %v303
        %v436 = vpop.f32.mrb[0].mxu0
        %v437 = vadd.f32 0.0, %v436
        %v438 = vpop.f32.mrb[0].mxu0
        %439 = vmatprep.mubr.f32.mxu0 0.0
        %440 = vmatmul.mubr.f32.gmra.mrb[0].mxu0 %v306
        %v441 = vpop.f32.mrb[0].mxu0
        %v442 = vadd.f32 0.0, %v441
        %v443 = vpop.f32.mrb[0].mxu0
        %444 = vmatprep.mubr.f32.mxu0 0.0
        %445 = vmatmul.mubr.f32.gmra.mrb[0].mxu0 %v309
        %v446 = vpop.f32.mrb[0].mxu0
        %v447 = vadd.f32 0.0, %v446
        %v448 = vpop.f32.mrb[0].mxu0
        %449 = vmatprep.mubr.f32.mxu0 0.0
        %450 = vmatmul.mubr.f32.gmra.mrb[0].mxu0 %v312
        %v451 = vpop.f32.mrb[0].mxu0
        %v452 = vadd.f32 0.0, %v451
        %v453 = vpop.f32.mrb[0].mxu0
        %454 = vmatprep.mubr.f32.mxu0 0.0
        %455 = vmatmul.mubr.f32.gmra.mrb[0].mxu0 %v315
        %v456 = vpop.f32.mrb[0].mxu0
        %v457 = vadd.f32 0.0, %v456
        %v458 = vpop.f32.mrb[0].mxu0
        %459 = vmatprep.mubr.f32.mxu0 0.0
        %460 = vmatmul.mubr.f32.gmra.mrb[0].mxu0 %v318
        %v461 = vpop.f32.mrb[0].mxu0
        %v462 = vadd.f32 0.0, %v461
        %v463 = vpop.f32.mrb[0].mxu0
        %464 = vmatprep.mubr.f32.mxu0 0.0
        %465 = vmatmul.mubr.f32.gmra.mrb[0].mxu0 %v321
        %v466 = vpop.f32.mrb[0].mxu0
        %v467 = vadd.f32 0.0, %v466
        %v468 = vpop.f32.mrb[0].mxu0
        %469 = vmatprep.mubr.f32.mxu0 0.0
        %470 = vmatmul.mubr.f32.gmra.mrb[0].mxu0 %v324
        %v471 = vpop.f32.mrb[0].mxu0
        %v472 = vadd.f32 0.0, %v471
        %v473 = vpop.f32.mrb[0].mxu0
        %474 = vdwg.mxu0
        %v475 = vld [vmem:[%s202] sm:$0xff]
        %v476 = vld [vmem:[%s202 + $0x8] sm:$0xff]
        %v477 = vld [vmem:[%s202 + $0x10] sm:$0xff]
        %v478 = vld [vmem:[%s202 + $0x18] sm:$0xff]
        %v479 = vld [vmem:[%s202 + $0x20] sm:$0xff]
        %v480 = vld [vmem:[%s202 + $0x28] sm:$0xff]
        %v481 = vld [vmem:[%s202 + $0x30] sm:$0xff]
        %v482 = vld [vmem:[%s202 + $0x38] sm:$0xff]
        %v483 = vld [vmem:[%s202 + $0x40] sm:$0xff]
        %v484 = vld [vmem:[%s202 + $0x48] sm:$0xff]
        %v485 = vld [vmem:[%s202 + $0x50] sm:$0xff]
        %v486 = vld [vmem:[%s202 + $0x58] sm:$0xff]
        %v487 = vld [vmem:[%s202 + $0x60] sm:$0xff]
        %v488 = vld [vmem:[%s202 + $0x68] sm:$0xff]
        %v489 = vld [vmem:[%s202 + $0x70] sm:$0xff]
        %v490 = vld [vmem:[%s202 + $0x78] sm:$0xff]
        %v491 = vmul.f32 %v397, 0.5
        %v492 = vmul.f32 %v402, 0.5
        %v493 = vmul.f32 %v407, 0.5
        %v494 = vmul.f32 %v412, 0.5
        %v495 = vmul.f32 %v417, 0.5
        %v496 = vmul.f32 %v422, 0.5
        %v497 = vmul.f32 %v427, 0.5
        %v498 = vmul.f32 %v432, 0.5
        %v499 = vmul.f32 %v437, 0.5
        %v500 = vmul.f32 %v442, 0.5
        %v501 = vmul.f32 %v447, 0.5
        %v502 = vmul.f32 %v452, 0.5
        %v503 = vmul.f32 %v457, 0.5
        %v504 = vmul.f32 %v462, 0.5
        %v505 = vmul.f32 %v467, 0.5
        %v506 = vmul.f32 %v472, 0.5
        %v507 = vadd.f32 %v475, %v491
        %v508 = vadd.f32 %v476, %v492
        %v509 = vadd.f32 %v477, %v493
        %v510 = vadd.f32 %v478, %v494
        %v511 = vadd.f32 %v479, %v495
        %v512 = vadd.f32 %v480, %v496
        %v513 = vadd.f32 %v481, %v497
        %v514 = vadd.f32 %v482, %v498
        %v515 = vadd.f32 %v483, %v499
        %v516 = vadd.f32 %v484, %v500
        %v517 = vadd.f32 %v485, %v501
        %v518 = vadd.f32 %v486, %v502
        %v519 = vadd.f32 %v487, %v503
        %v520 = vadd.f32 %v488, %v504
        %v521 = vadd.f32 %v489, %v505
        %v522 = vadd.f32 %v490, %v506
        %523 = vst [vmem:[%s232] sm:$0xff] %v507
        %524 = vst [vmem:[%s232 + $0x8] sm:$0xff] %v508
        %525 = vst [vmem:[%s232 + $0x10] sm:$0xff] %v509
        %526 = vst [vmem:[%s232 + $0x18] sm:$0xff] %v510
        %527 = vst [vmem:[%s232 + $0x20] sm:$0xff] %v511
        %528 = vst [vmem:[%s232 + $0x28] sm:$0xff] %v512
        %529 = vst [vmem:[%s232 + $0x30] sm:$0xff] %v513
        %530 = vst [vmem:[%s232 + $0x38] sm:$0xff] %v514
        %531 = vst [vmem:[%s232 + $0x40] sm:$0xff] %v515
        %532 = vst [vmem:[%s232 + $0x48] sm:$0xff] %v516
        %533 = vst [vmem:[%s232 + $0x50] sm:$0xff] %v517
        %534 = vst [vmem:[%s232 + $0x58] sm:$0xff] %v518
        %535 = vst [vmem:[%s232 + $0x60] sm:$0xff] %v519
        %536 = vst [vmem:[%s232 + $0x68] sm:$0xff] %v520
        %537 = vst [vmem:[%s232 + $0x70] sm:$0xff] %v521
        %538 = vst [vmem:[%s232 + $0x78] sm:$0xff] %v522
        %s539 = sand.u32 %s122, 1
        %s540 = scalar_lea.sflag [#allocation4], %s539
        %s541 = sand.u32 %s122, 1
        %s542 = smul.addr %s541, 128
        %s543 = scalar_lea.vmem [#allocation5], %s542
        // Predicated region
        $region37: #{tpu_custom_call.1} parent=31 // pred_check
          %p544 = pneg %p132
        $region38: #{tpu_custom_call.1} parent=31 // pred_check_branch
          %546 = sbr.rel (%p544) target = $region40
        $region39: #{tpu_custom_call.1} parent=31 // pred_region
          %s547 = smul.u32 16, %s24
          %s549 = ssub.s32 2048, 2048
          %550 = vsyncadd %s540, %s549
          %s551 = smul.addr %s547, 4
          %s552 = sadd.s32 %s25, %s551
          %s553 = smul.addr %s552, 128
          %s554 = scalar_lea.hbm %s3, %s553
          %s555 = sshll.u32 %s543, 4
          %s556 = int_to_ptr.vmem [resolvable:$true] %s555
          %561 = dma.vmem_to_hbm [thread:$0]  %s556, 2048, %s554, %s540, 128, 512, 8
        $region40: #{tpu_custom_call.1} parent=31 // pred_fallthru
          _
      $region32: #{tpu_custom_call.1} parent=5 // pred_fallthru
        _
      %p562 = scmp.le.s32.totalorder 2, %s15
      // Predicated region
      $region41: #{tpu_custom_call.1} parent=5 // pred_check
        %p563 = pneg %p562
      $region42: #{tpu_custom_call.1} parent=5 // pred_check_branch
        %565 = sbr.rel (%p563) target = $region44
      $region43: #{tpu_custom_call.1} parent=5 // pred_region
        %s566 = ssub.s32 %s15, 2
        // Predicated region
        $region45: #{tpu_custom_call.1} parent=43 // pred_check
          %p567 = pneg %p138
        $region46: #{tpu_custom_call.1} parent=43 // pred_check_branch
          %569 = sbr.rel (%p567) target = $region48
        $region47: #{tpu_custom_call.1} parent=43 // pred_region
          %s570 = sand.u32 %s123, 1
          %s571 = scalar_lea.sflag [#allocation4], %s570
          %s572 = sand.u32 %s123, 1
          %s573 = smul.addr %s572, 128
          %s574 = scalar_lea.vmem [#allocation5], %s573
          %575 = dma.done %s571, 2048
        $region48: #{tpu_custom_call.1} parent=43 // pred_fallthru
          _
      $region44: #{tpu_custom_call.1} parent=5 // pred_fallthru
        _
    $region6: #{tpu_custom_call.1} parent=1 // loop_footer
      %s19 = sadd.s32 1, %s15
    $region7: #{tpu_custom_call.1} parent=1 // loop_footer_branch
      %14 = sbr.rel target = $region3
    $region8: #{tpu_custom_call.1} parent=1 // loop_exit
      _
    %576 = vsyncpa [#allocation3], 1
    %s577 = scalar_lea.sflag [#allocation3], 1
    %578 = vsyncpa %s577, 1
    %579 = vsyncpa [#allocation4], 1
    %s580 = scalar_lea.sflag [#allocation4], 1
    %581 = vsyncpa %s580, 1

</llo_original>
